<compile_context>
chip_gen: v7x
topology: tpu7x:2x2x1
jax: 0.10.0
libtpu: 0.0.40
codegen_flags: <defaults>
</compile_context>

<pallas_src>
import math
import numpy as np
import jax
import jax.numpy as jnp
from jax import lax
from jax.experimental import pallas as pl
from jax.experimental.pallas import tpu as pltpu


# ----------------------------- Pallas kernel ------------------------------- #

def _up_fused_kernel(x_ref, a1_ref, a2_ref, a3_ref, b1_ref, bo_ref, alpha_ref,
                     o_ref):
    """Fused  out = PReLU( conv2(PReLU(conv1(x))) + conv1x1(x) )  for one
    (batch, row-tile) grid step.

    x_ref : (1, H+4, W*Cin)   bf16, 2 zero halo rows top/bottom, full image
                              resident across the row tiles of a batch element.
    a1_ref: (3, W*Cin,  W*Cout) bf16 banded conv1 weights (one per dh tap)
    a2_ref: (3, W*Cout, W*Cout) bf16 banded conv2 weights
    a3_ref: (W*Cin, W*Cout)     bf16 block-diagonal 1x1 weights
    b1_ref: (1, W*Cout) f32   conv1 bias tiled over W
    bo_ref: (1, W*Cout) f32   (conv2 bias + conv1x1 bias) tiled over W
    alpha_ref: (1, 1)  f32 in SMEM (shared PReLU slope)
    o_ref : (1, TH, W*Cout) f32
    """
    i = pl.program_id(1)
    TH = o_ref.shape[1]
    H = x_ref.shape[1] - 4
    a = alpha_ref[0, 0]

    r0 = i * TH
    if TH % 8 == 0:
        r0 = pl.multiple_of(r0, 8)
    xt = x_ref[0, pl.ds(r0, TH + 4), :]                  # (TH+4, W*Cin) bf16

    # ---- stage 1: conv1 + PReLU on TH+2 halo rows (orig rows i*TH-1..i*TH+TH)
    s1 = jnp.dot(xt[0:TH + 2, :], a1_ref[0],
                 preferred_element_type=jnp.float32)
    s1 = s1 + jnp.dot(xt[1:TH + 3, :], a1_ref[1],
                      preferred_element_type=jnp.float32)
    s1 = s1 + jnp.dot(xt[2:TH + 4, :], a1_ref[2],
                      preferred_element_type=jnp.float32)
    s1 = s1 + b1_ref[...]
    e1 = jnp.where(s1 >= 0.0, s1, a * s1)
    # rows outside the image act as conv2's zero 'SAME' padding
    row = i * TH - 1 + lax.broadcasted_iota(jnp.int32, (TH + 2, 1), 0)
    e1 = jnp.where((row >= 0) & (row < H), e1, 0.0).astype(jnp.bfloat16)

    # ---- stage 2: conv2 + 1x1 residual + bias + PReLU on the TH output rows -
    s2 = jnp.dot(e1[0:TH, :], a2_ref[0], preferred_element_type=jnp.float32)
    s2 = s2 + jnp.dot(e1[1:TH + 1, :], a2_ref[1],
                      preferred_element_type=jnp.float32)
    s2 = s2 + jnp.dot(e1[2:TH + 2, :], a2_ref[2],
                      preferred_element_type=jnp.float32)
    s2 = s2 + jnp.dot(xt[2:TH + 2, :], a3_ref[...],
                      preferred_element_type=jnp.float32)
    s2 = s2 + bo_ref[...]
    out = jnp.where(s2 >= 0.0, s2, a * s2)
    o_ref[0, :, :] = out.astype(o_ref.dtype)


# ------------------------------- JAX glue ---------------------------------- #

def _pick_th(H):
    """Row-tile height: multiple of 8 (sublane), >=2 tiles when possible."""
    for th in (64, 32, 16, 8):
        if H % th == 0 and H // th >= 2:
            return th
    return H


def _band_weights(w_hwio, W):
    """Fold a 3x3 HWIO kernel into 3 banded (W*Cin, W*Cout) matrices.

    A[dh][w*Cin+ci, v*Cout+co] = w[dh, dw, ci, co] with dw = w - v + 1 (zero
    outside the band), so   out_row[v] = sum_dh in_row[v+dh-1] @ A[dh]
    implements the 'SAME'-padded 3x3 conv along both H and W.
    """
    _, _, Ci, Co = w_hwio.shape
    P = np.stack([np.eye(W, k=1 - dw, dtype=np.float32) for dw in range(3)])
    A = jnp.einsum('dwv,hdio->hwivo', jnp.asarray(P), w_hwio)
    return A.reshape(3, W * Ci, W * Co)


def up_forward(x_nchw, params):
    """Pallas forward of `up`.  x_nchw: (N, Cin, H, W) f32 -> (N, Cout, H, W)."""
    w1, b1, w2, b2, w3, b3, alpha = params
    N, Cin, H, W = x_nchw.shape
    Cout = w1.shape[-1]
    TH = _pick_th(H)
    n_rt = H // TH
    WCi, WCo = W * Cin, W * Cout

    # NHWC, rows flattened to W*Cin lanes, 2 zero halo rows top/bottom, bf16.
    x = jnp.transpose(x_nchw, (0, 2, 3, 1)).reshape(N, H, WCi)
    xp = jnp.pad(x, ((0, 0), (2, 2), (0, 0))).astype(jnp.bfloat16)

    a1 = _band_weights(w1, W).astype(jnp.bfloat16)            # (3, WCi, WCo)
    a2 = _band_weights(w2, W).astype(jnp.bfloat16)            # (3, WCo, WCo)
    a3 = jnp.einsum('wv,io->wivo', jnp.eye(W, dtype=jnp.float32), w3)
    a3 = a3.reshape(WCi, WCo).astype(jnp.bfloat16)            # block-diag 1x1
    b1row = jnp.tile(b1, W).reshape(1, WCo).astype(jnp.float32)
    borow = jnp.tile(b2 + b3, W).reshape(1, WCo).astype(jnp.float32)
    alpha_arr = jnp.asarray(alpha, jnp.float32).reshape(1, 1)

    out_flat = pl.pallas_call(
        _up_fused_kernel,
        out_shape=jax.ShapeDtypeStruct((N, H, WCo), jnp.float32),
        grid=(N, n_rt),
        in_specs=[
            pl.BlockSpec((1, H + 4, WCi), lambda n, i: (n, 0, 0)),   # image
            pl.BlockSpec((3, WCi, WCo), lambda n, i: (0, 0, 0)),     # conv1
            pl.BlockSpec((3, WCo, WCo), lambda n, i: (0, 0, 0)),     # conv2
            pl.BlockSpec((WCi, WCo), lambda n, i: (0, 0)),           # 1x1
            pl.BlockSpec((1, WCo), lambda n, i: (0, 0)),             # bias1
            pl.BlockSpec((1, WCo), lambda n, i: (0, 0)),             # bias2+3
            pl.BlockSpec((1, 1), lambda n, i: (0, 0),
                         memory_space=pltpu.MemorySpace.SMEM),       # alpha
        ],
        out_specs=pl.BlockSpec((1, TH, WCo), lambda n, i: (n, i, 0)),
        compiler_params=pltpu.CompilerParams(
            dimension_semantics=("parallel", "parallel")),
    )(xp, a1, a2, a3, b1row, borow, alpha_arr)

    out = out_flat.reshape(N, H, W, Cout)
    return jnp.transpose(out, (0, 3, 1, 2))                  # back to NCHW


# ---------------------- parameters (deterministic init) --------------------- #

def init_params(key, inC, outC):
    """Mirror the module's __init__: Conv2d weights ~ N(0, sqrt(2/(k*k*outC))),
    Conv2d bias = PyTorch default U(+-1/sqrt(fan_in)).  The module has a single
    nn.PReLU() applied twice, so ONE shared alpha (= 0.25) is correct."""
    k = jax.random.split(key, 6)
    std3x3 = math.sqrt(2.0 / (3 * 3 * outC))
    std1x1 = math.sqrt(2.0 / (1 * 1 * outC))
    w1 = std3x3 * jax.random.normal(k[0], (3, 3, inC, outC), jnp.float32)   # HWIO
    w2 = std3x3 * jax.random.normal(k[1], (3, 3, outC, outC), jnp.float32)  # HWIO
    w3 = std1x1 * jax.random.normal(k[2], (inC, outC), jnp.float32)         # 1x1
    b1 = jax.random.uniform(k[3], (outC,), jnp.float32,
                            -1.0 / math.sqrt(9 * inC), 1.0 / math.sqrt(9 * inC))
    b2 = jax.random.uniform(k[4], (outC,), jnp.float32,
                            -1.0 / math.sqrt(9 * outC), 1.0 / math.sqrt(9 * outC))
    b3 = jax.random.uniform(k[5], (outC,), jnp.float32,
                            -1.0 / math.sqrt(inC), 1.0 / math.sqrt(inC))
    alpha = jnp.float32(0.25)
    return (w1, b1, w2, b2, w3, b3, alpha)


# ------------------------ pure-JAX reference (check) ------------------------ #

def up_forward_ref(x_nchw, params):
    w1, b1, w2, b2, w3, b3, alpha = params
    dn = ('NHWC', 'HWIO', 'NHWC')
    prelu = lambda v: jnp.where(v >= 0.0, v, alpha * v)
    x = jnp.transpose(x_nchw, (0, 2, 3, 1))
    o = lax.conv_general_dilated(x, w1, (1, 1), 'SAME', dimension_numbers=dn) + b1
    o = prelu(o)
    o = lax.conv_general_dilated(o, w2, (1, 1), 'SAME', dimension_numbers=dn) + b2
    r = lax.conv_general_dilated(x, w3.reshape(1, 1, *w3.shape), (1, 1), 'SAME',
                                 dimension_numbers=dn) + b3
    o = prelu(o + r)
    return jnp.transpose(o, (0, 3, 1, 2))


# ----------------------------------- main ----------------------------------- #

if __name__ == "__main__":
    key = jax.random.PRNGKey(0)
    kx, kp = jax.random.split(key)

    N, Cin, Cout, H, W = 2, 4, 8, 16, 16
    x = jax.random.normal(kx, (N, Cin, H, W), jnp.float32)
    params = init_params(kp, Cin, Cout)

    out = jax.jit(up_forward)(x, params)
    out = jax.block_until_ready(out)

    ref = up_forward_ref(x, params)
    assert out.shape == (N, Cout, H, W), out.shape
    # Streamed operands are bf16 (f32 accumulation), so tolerance is bf16-level.
    np.testing.assert_allclose(np.asarray(out), np.asarray(ref),
                               rtol=5e-2, atol=5e-2)
    print("KERNEL_OK")
</pallas_src>

<mosaic_0001>
module attributes {stable_mosaic.version = 11 : i64} {
  func.func @_up_fused_kernel(%arg0: i32, %arg1: i32, %arg2: memref<1x20x64xbf16, #tpu.memory_space<vmem>>, %arg3: memref<3x64x128xbf16, #tpu.memory_space<vmem>>, %arg4: memref<3x128x128xbf16, #tpu.memory_space<vmem>>, %arg5: memref<64x128xbf16, #tpu.memory_space<vmem>>, %arg6: memref<1x128xf32, #tpu.memory_space<vmem>>, %arg7: memref<1x128xf32, #tpu.memory_space<vmem>>, %arg8: memref<1x1xf32, #tpu.memory_space<smem>>, %arg9: memref<1x8x128xf32, #tpu.memory_space<vmem>>) attributes {dimension_semantics = [#tpu.dimension_semantics<parallel>, #tpu.dimension_semantics<parallel>], iteration_bounds = array<i64: 2, 2>, scalar_prefetch = 0 : i64, scratch_operands = 0 : i64, tpu.core_type = #tpu.core_type<tc>, window_params = [{transform_indices = @transform_0, window_bounds = array<i64: 1, 20, 64>}, {pipeline_mode = #tpu.pipeline_mode<synchronous>, transform_indices = @transform_1, window_bounds = array<i64: 3, 64, 128>}, {pipeline_mode = #tpu.pipeline_mode<synchronous>, transform_indices = @transform_2, window_bounds = array<i64: 3, 128, 128>}, {pipeline_mode = #tpu.pipeline_mode<synchronous>, transform_indices = @transform_3, window_bounds = array<i64: 64, 128>}, {pipeline_mode = #tpu.pipeline_mode<synchronous>, transform_indices = @transform_4, window_bounds = array<i64: 1, 128>}, {pipeline_mode = #tpu.pipeline_mode<synchronous>, transform_indices = @transform_5, window_bounds = array<i64: 1, 128>}, {transform_indices = @transform_6, window_bounds = array<i64: 1, 1>}, {transform_indices = @transform_7, window_bounds = array<i64: 1, 8, 128>}]} {
    %c0 = arith.constant 0 : index
    %c0_0 = arith.constant 0 : index
    %0 = memref.load %arg8[%c0, %c0_0] : memref<1x1xf32, #tpu.memory_space<smem>>
    %c8_i32 = arith.constant 8 : i32
    %1 = arith.muli %arg1, %c8_i32 : i32
    %2 = tpu.assume_multiple %1, 8 : i32
    %c0_1 = arith.constant 0 : index
    %3 = arith.index_cast %2 : i32 to index
    %c0_2 = arith.constant 0 : index
    %4 = vector.load %arg2[%c0_1, %3, %c0_2] : memref<1x20x64xbf16, #tpu.memory_space<vmem>>, vector<1x12x64xbf16>
    %5 = vector.shape_cast %4 : vector<1x12x64xbf16> to vector<12x64xbf16>
    %6 = vector.extract_strided_slice %5 {offsets = [0, 0], sizes = [10, 64], strides = [1, 1]} : vector<12x64xbf16> to vector<10x64xbf16>
    %c0_3 = arith.constant 0 : index
    %c0_4 = arith.constant 0 : index
    %c0_5 = arith.constant 0 : index
    %7 = vector.load %arg3[%c0_3, %c0_4, %c0_5] : memref<3x64x128xbf16, #tpu.memory_space<vmem>>, vector<1x64x128xbf16>
    %8 = vector.shape_cast %7 : vector<1x64x128xbf16> to vector<64x128xbf16>
    %cst = arith.constant dense<0.000000e+00> : vector<10x128xf32>
    %9 = tpu.matmul %6, %8, %cst {dimension_numbers = #tpu.dot_dimension_numbers<[1], [0], [0], [1], [0, 0, 1, 1], [], []>} : vector<10x64xbf16>, vector<64x128xbf16>, vector<10x128xf32> -> vector<10x128xf32>
    %10 = vector.extract_strided_slice %5 {offsets = [1, 0], sizes = [10, 64], strides = [1, 1]} : vector<12x64xbf16> to vector<10x64xbf16>
    %c1 = arith.constant 1 : index
    %c0_6 = arith.constant 0 : index
    %c0_7 = arith.constant 0 : index
    %11 = vector.load %arg3[%c1, %c0_6, %c0_7] : memref<3x64x128xbf16, #tpu.memory_space<vmem>>, vector<1x64x128xbf16>
    %12 = vector.shape_cast %11 : vector<1x64x128xbf16> to vector<64x128xbf16>
    %cst_8 = arith.constant dense<0.000000e+00> : vector<10x128xf32>
    %13 = tpu.matmul %10, %12, %cst_8 {dimension_numbers = #tpu.dot_dimension_numbers<[1], [0], [0], [1], [0, 0, 1, 1], [], []>} : vector<10x64xbf16>, vector<64x128xbf16>, vector<10x128xf32> -> vector<10x128xf32>
    %14 = arith.addf %9, %13 : vector<10x128xf32>
    %15 = vector.extract_strided_slice %5 {offsets = [2, 0], sizes = [10, 64], strides = [1, 1]} : vector<12x64xbf16> to vector<10x64xbf16>
    %c2 = arith.constant 2 : index
    %c0_9 = arith.constant 0 : index
    %c0_10 = arith.constant 0 : index
    %16 = vector.load %arg3[%c2, %c0_9, %c0_10] : memref<3x64x128xbf16, #tpu.memory_space<vmem>>, vector<1x64x128xbf16>
    %17 = vector.shape_cast %16 : vector<1x64x128xbf16> to vector<64x128xbf16>
    %cst_11 = arith.constant dense<0.000000e+00> : vector<10x128xf32>
    %18 = tpu.matmul %15, %17, %cst_11 {dimension_numbers = #tpu.dot_dimension_numbers<[1], [0], [0], [1], [0, 0, 1, 1], [], []>} : vector<10x64xbf16>, vector<64x128xbf16>, vector<10x128xf32> -> vector<10x128xf32>
    %19 = arith.addf %14, %18 : vector<10x128xf32>
    %c0_12 = arith.constant 0 : index
    %c0_13 = arith.constant 0 : index
    %20 = vector.load %arg6[%c0_12, %c0_13] : memref<1x128xf32, #tpu.memory_space<vmem>>, vector<1x128xf32>
    %21 = vector.broadcast %20 : vector<1x128xf32> to vector<10x128xf32>
    %22 = arith.addf %19, %21 : vector<10x128xf32>
    %cst_14 = arith.constant 0.000000e+00 : f32
    %23 = vector.broadcast %cst_14 : f32 to vector<10x128xf32>
    %24 = arith.cmpf oge, %22, %23 : vector<10x128xf32>
    %25 = vector.broadcast %0 : f32 to vector<10x128xf32>
    %26 = arith.mulf %25, %22 : vector<10x128xf32>
    %27 = arith.select %24, %22, %26 : vector<10x128xi1>, vector<10x128xf32>
    %c8_i32_15 = arith.constant 8 : i32
    %28 = arith.muli %arg1, %c8_i32_15 : i32
    %c1_i32 = arith.constant 1 : i32
    %29 = arith.subi %28, %c1_i32 : i32
    %30 = tpu.iota {dimensions = array<i32: 0>} : vector<10x1xi32>
    %31 = vector.broadcast %29 : i32 to vector<10x1xi32>
    %32 = arith.addi %31, %30 : vector<10x1xi32>
    %c0_i32 = arith.constant 0 : i32
    %33 = vector.broadcast %c0_i32 : i32 to vector<10x1xi32>
    %34 = arith.cmpi sge, %32, %33 : vector<10x1xi32>
    %c16_i32 = arith.constant 16 : i32
    %35 = vector.broadcast %c16_i32 : i32 to vector<10x1xi32>
    %36 = arith.cmpi slt, %32, %35 : vector<10x1xi32>
    %37 = arith.andi %34, %36 : vector<10x1xi1>
    %cst_16 = arith.constant 0.000000e+00 : f32
    %38 = vector.shape_cast %37 : vector<10x1xi1> to vector<10x1xi1>
    %39 = vector.broadcast %38 : vector<10x1xi1> to vector<10x128xi1>
    %40 = vector.broadcast %cst_16 : f32 to vector<10x128xf32>
    %41 = arith.select %39, %27, %40 : vector<10x128xi1>, vector<10x128xf32>
    %42 = arith.truncf %41 : vector<10x128xf32> to vector<10x128xbf16>
    %43 = vector.extract_strided_slice %42 {offsets = [0, 0], sizes = [8, 128], strides = [1, 1]} : vector<10x128xbf16> to vector<8x128xbf16>
    %c0_17 = arith.constant 0 : index
    %c0_18 = arith.constant 0 : index
    %c0_19 = arith.constant 0 : index
    %44 = vector.load %arg4[%c0_17, %c0_18, %c0_19] : memref<3x128x128xbf16, #tpu.memory_space<vmem>>, vector<1x128x128xbf16>
    %45 = vector.shape_cast %44 : vector<1x128x128xbf16> to vector<128x128xbf16>
    %cst_20 = arith.constant dense<0.000000e+00> : vector<8x128xf32>
    %46 = tpu.matmul %43, %45, %cst_20 {dimension_numbers = #tpu.dot_dimension_numbers<[1], [0], [0], [1], [0, 0, 1, 1], [], []>} : vector<8x128xbf16>, vector<128x128xbf16>, vector<8x128xf32> -> vector<8x128xf32>
    %47 = vector.extract_strided_slice %42 {offsets = [1, 0], sizes = [8, 128], strides = [1, 1]} : vector<10x128xbf16> to vector<8x128xbf16>
    %c1_21 = arith.constant 1 : index
    %c0_22 = arith.constant 0 : index
    %c0_23 = arith.constant 0 : index
    %48 = vector.load %arg4[%c1_21, %c0_22, %c0_23] : memref<3x128x128xbf16, #tpu.memory_space<vmem>>, vector<1x128x128xbf16>
    %49 = vector.shape_cast %48 : vector<1x128x128xbf16> to vector<128x128xbf16>
    %cst_24 = arith.constant dense<0.000000e+00> : vector<8x128xf32>
    %50 = tpu.matmul %47, %49, %cst_24 {dimension_numbers = #tpu.dot_dimension_numbers<[1], [0], [0], [1], [0, 0, 1, 1], [], []>} : vector<8x128xbf16>, vector<128x128xbf16>, vector<8x128xf32> -> vector<8x128xf32>
    %51 = arith.addf %46, %50 : vector<8x128xf32>
    %52 = vector.extract_strided_slice %42 {offsets = [2, 0], sizes = [8, 128], strides = [1, 1]} : vector<10x128xbf16> to vector<8x128xbf16>
    %c2_25 = arith.constant 2 : index
    %c0_26 = arith.constant 0 : index
    %c0_27 = arith.constant 0 : index
    %53 = vector.load %arg4[%c2_25, %c0_26, %c0_27] : memref<3x128x128xbf16, #tpu.memory_space<vmem>>, vector<1x128x128xbf16>
    %54 = vector.shape_cast %53 : vector<1x128x128xbf16> to vector<128x128xbf16>
    %cst_28 = arith.constant dense<0.000000e+00> : vector<8x128xf32>
    %55 = tpu.matmul %52, %54, %cst_28 {dimension_numbers = #tpu.dot_dimension_numbers<[1], [0], [0], [1], [0, 0, 1, 1], [], []>} : vector<8x128xbf16>, vector<128x128xbf16>, vector<8x128xf32> -> vector<8x128xf32>
    %56 = arith.addf %51, %55 : vector<8x128xf32>
    %57 = vector.extract_strided_slice %5 {offsets = [2, 0], sizes = [8, 64], strides = [1, 1]} : vector<12x64xbf16> to vector<8x64xbf16>
    %c0_29 = arith.constant 0 : index
    %c0_30 = arith.constant 0 : index
    %58 = vector.load %arg5[%c0_29, %c0_30] : memref<64x128xbf16, #tpu.memory_space<vmem>>, vector<64x128xbf16>
    %cst_31 = arith.constant dense<0.000000e+00> : vector<8x128xf32>
    %59 = tpu.matmul %57, %58, %cst_31 {dimension_numbers = #tpu.dot_dimension_numbers<[1], [0], [0], [1], [0, 0, 1, 1], [], []>} : vector<8x64xbf16>, vector<64x128xbf16>, vector<8x128xf32> -> vector<8x128xf32>
    %60 = arith.addf %56, %59 : vector<8x128xf32>
    %c0_32 = arith.constant 0 : index
    %c0_33 = arith.constant 0 : index
    %61 = vector.load %arg7[%c0_32, %c0_33] : memref<1x128xf32, #tpu.memory_space<vmem>>, vector<1x128xf32>
    %62 = vector.broadcast %61 : vector<1x128xf32> to vector<8x128xf32>
    %63 = arith.addf %60, %62 : vector<8x128xf32>
    %cst_34 = arith.constant 0.000000e+00 : f32
    %64 = vector.broadcast %cst_34 : f32 to vector<8x128xf32>
    %65 = arith.cmpf oge, %63, %64 : vector<8x128xf32>
    %66 = vector.broadcast %0 : f32 to vector<8x128xf32>
    %67 = arith.mulf %66, %63 : vector<8x128xf32>
    %68 = arith.select %65, %63, %67 : vector<8x128xi1>, vector<8x128xf32>
    %c0_35 = arith.constant 0 : index
    %c0_36 = arith.constant 0 : index
    %c0_37 = arith.constant 0 : index
    %69 = vector.load %arg9[%c0_35, %c0_36, %c0_37] : memref<1x8x128xf32, #tpu.memory_space<vmem>>, vector<1x8x128xf32>
    %70 = vector.shape_cast %69 : vector<1x8x128xf32> to vector<8x128xf32>
    %71 = vector.shape_cast %68 : vector<8x128xf32> to vector<1x8x128xf32>
    tpu.vector_store %arg9[%c0_35, %c0_36, %c0_37], %71 {strides = array<i32>} : memref<1x8x128xf32, #tpu.memory_space<vmem>>, vector<1x8x128xf32>,
    return
  }
  func.func @transform_0(%arg0: i32, %arg1: i32) -> (i32, i32, i32) {
    %c0_i32 = arith.constant 0 : i32
    %c0_i32_0 = arith.constant 0 : i32
    %c0_i32_1 = arith.constant 0 : i32
    return %arg0, %c0_i32, %c0_i32_0 : i32, i32, i32
  }
  func.func @transform_1(%arg0: i32, %arg1: i32) -> (i32, i32, i32) {
    %c0_i32 = arith.constant 0 : i32
    %c0_i32_0 = arith.constant 0 : i32
    %c0_i32_1 = arith.constant 0 : i32
    %c0_i32_2 = arith.constant 0 : i32
    return %c0_i32, %c0_i32_0, %c0_i32_1 : i32, i32, i32
  }
  func.func @transform_2(%arg0: i32, %arg1: i32) -> (i32, i32, i32) {
    %c0_i32 = arith.constant 0 : i32
    %c0_i32_0 = arith.constant 0 : i32
    %c0_i32_1 = arith.constant 0 : i32
    %c0_i32_2 = arith.constant 0 : i32
    return %c0_i32, %c0_i32_0, %c0_i32_1 : i32, i32, i32
  }
  func.func @transform_3(%arg0: i32, %arg1: i32) -> (i32, i32) {
    %c0_i32 = arith.constant 0 : i32
    %c0_i32_0 = arith.constant 0 : i32
    %c0_i32_1 = arith.constant 0 : i32
    return %c0_i32, %c0_i32_0 : i32, i32
  }
  func.func @transform_4(%arg0: i32, %arg1: i32) -> (i32, i32) {
    %c0_i32 = arith.constant 0 : i32
    %c0_i32_0 = arith.constant 0 : i32
    %c0_i32_1 = arith.constant 0 : i32
    return %c0_i32, %c0_i32_0 : i32, i32
  }
  func.func @transform_5(%arg0: i32, %arg1: i32) -> (i32, i32) {
    %c0_i32 = arith.constant 0 : i32
    %c0_i32_0 = arith.constant 0 : i32
    %c0_i32_1 = arith.constant 0 : i32
    return %c0_i32, %c0_i32_0 : i32, i32
  }
  func.func @transform_6(%arg0: i32, %arg1: i32) -> (i32, i32) {
    %c0_i32 = arith.constant 0 : i32
    %c0_i32_0 = arith.constant 0 : i32
    %c0_i32_1 = arith.constant 0 : i32
    return %c0_i32, %c0_i32_0 : i32, i32
  }
  func.func @transform_7(%arg0: i32, %arg1: i32) -> (i32, i32, i32) {
    %c0_i32 = arith.constant 0 : i32
    %c0_i32_0 = arith.constant 0 : i32
    return %arg0, %arg1, %c0_i32 : i32, i32, i32
  }
}

</mosaic_0001>

<llo_original>
// kernel: tile.18
$region0: #{tile.18}
  #allocation0 [shape = 's32[1]{0}', space=sflag, size = 0x4, scoped, tag = 'scoped memory for tile.18']
  %s0 = inlined_call_operand.vmem [shape: f32[8], index: 0, kind: input, shape index: {}]
  %s1 = inlined_call_operand.vmem [shape: f32[16,8], index: 1, kind: output, shape index: {}]
  // Predicated region
  $region2: #{tile.18} parent=0 // pred_check
    _
  $region3: #{tile.18} parent=0 // pred_check_branch
    %3 = sbr.rel (0) target = $region5
  $region4: #{tile.18} parent=0 // pred_region
    _
  $region5: #{tile.18} parent=0 // pred_fallthru
    _
  %v4 = vld [vmem:[%s0] ss:$0 sm:$0xff]
  %5 = vst [vmem:[%s1] sm:$0xff] %v4
  %s6 = scalar_lea.vmem %s1, 8
  %7 = vst [vmem:[%s6] sm:$0xff] %v4

// kernel: tile.19
$region0: #{tile.19}
  %s0 = inlined_call_operand.vmem [shape: f32[16,8], index: 0, kind: input, shape index: {}]
  %s1 = inlined_call_operand.vmem [shape: f32[1,128], index: 1, kind: output, shape index: {}]
  $region1: #{tile.19} parent=0
    #allocation0 [shape = 'u8[4096]{0}', space=vmem, size = 0x1000, scoped, tag = 'scoped mem for output reshape']
    %v2 = vld [vmem:[%s0] sm:$0x1]
    %vm3 = vcmask 64512
    %4 = vst.msk [vmem:[#allocation0] sm:$0x1] %vm3, %v2
    %s5 = scalar_lea.vmem %s0, 15
    %v6 = vld [vmem:[%s5] sm:$0x1]
    %7 = vrot.lane.b32.xlu0 %v6, 120
    %v8 = vpop.permute.xlu0 %7
    %vm9 = vcmask 1048512
    %10 = vst.msk [vmem:[#allocation0] sm:$0x1] %vm9, %v8
    %s11 = scalar_lea.vmem %s0, 14
    %v12 = vld [vmem:[%s11] sm:$0x1]
    %13 = vrot.lane.b32.xlu0 %v12, 112
    %v14 = vpop.permute.xlu0 %13
    %vm15 = vcmask 982912
    %16 = vst.msk [vmem:[#allocation0] sm:$0x1] %vm15, %v14
    %s17 = scalar_lea.vmem %s0, 13
    %v18 = vld [vmem:[%s17] sm:$0x1]
    %19 = vrot.lane.b32.xlu0 %v18, 104
    %v20 = vpop.permute.xlu0 %19
    %vm21 = vcmask 917312
    %22 = vst.msk [vmem:[#allocation0] sm:$0x1] %vm21, %v20
    %s23 = scalar_lea.vmem %s0, 12
    %v24 = vld [vmem:[%s23] sm:$0x1]
    %25 = vrot.lane.b32.xlu0 %v24, 96
    %v26 = vpop.permute.xlu0 %25
    %vm27 = vcmask 851712
    %28 = vst.msk [vmem:[#allocation0] sm:$0x1] %vm27, %v26
    %s29 = scalar_lea.vmem %s0, 11
    %v30 = vld [vmem:[%s29] sm:$0x1]
    %31 = vrot.lane.b32.xlu0 %v30, 88
    %v32 = vpop.permute.xlu0 %31
    %vm33 = vcmask 786112
    %34 = vst.msk [vmem:[#allocation0] sm:$0x1] %vm33, %v32
    %s35 = scalar_lea.vmem %s0, 10
    %v36 = vld [vmem:[%s35] sm:$0x1]
    %37 = vrot.lane.b32.xlu0 %v36, 80
    %v38 = vpop.permute.xlu0 %37
    %vm39 = vcmask 720512
    %40 = vst.msk [vmem:[#allocation0] sm:$0x1] %vm39, %v38
    %s41 = scalar_lea.vmem %s0, 9
    %v42 = vld [vmem:[%s41] sm:$0x1]
    %43 = vrot.lane.b32.xlu0 %v42, 72
    %v44 = vpop.permute.xlu0 %43
    %vm45 = vcmask 654912
    %46 = vst.msk [vmem:[#allocation0] sm:$0x1] %vm45, %v44
    %s47 = scalar_lea.vmem %s0, 8
    %v48 = vld [vmem:[%s47] sm:$0x1]
    %49 = vrot.lane.b32.xlu0 %v48, 64
    %v50 = vpop.permute.xlu0 %49
    %vm51 = vcmask 589312
    %52 = vst.msk [vmem:[#allocation0] sm:$0x1] %vm51, %v50
    %s53 = scalar_lea.vmem %s0, 7
    %v54 = vld [vmem:[%s53] sm:$0x1]
    %55 = vrot.lane.b32.xlu0 %v54, 56
    %v56 = vpop.permute.xlu0 %55
    %vm57 = vcmask 523712
    %58 = vst.msk [vmem:[#allocation0] sm:$0x1] %vm57, %v56
    %s59 = scalar_lea.vmem %s0, 6
    %v60 = vld [vmem:[%s59] sm:$0x1]
    %61 = vrot.lane.b32.xlu0 %v60, 48
    %v62 = vpop.permute.xlu0 %61
    %vm63 = vcmask 458112
    %64 = vst.msk [vmem:[#allocation0] sm:$0x1] %vm63, %v62
    %s65 = scalar_lea.vmem %s0, 5
    %v66 = vld [vmem:[%s65] sm:$0x1]
    %67 = vrot.lane.b32.xlu0 %v66, 40
    %v68 = vpop.permute.xlu0 %67
    %vm69 = vcmask 392512
    %70 = vst.msk [vmem:[#allocation0] sm:$0x1] %vm69, %v68
    %s71 = scalar_lea.vmem %s0, 4
    %v72 = vld [vmem:[%s71] sm:$0x1]
    %73 = vrot.lane.b32.xlu0 %v72, 32
    %v74 = vpop.permute.xlu0 %73
    %vm75 = vcmask 326912
    %76 = vst.msk [vmem:[#allocation0] sm:$0x1] %vm75, %v74
    %s77 = scalar_lea.vmem %s0, 3
    %v78 = vld [vmem:[%s77] sm:$0x1]
    %79 = vrot.lane.b32.xlu0 %v78, 24
    %v80 = vpop.permute.xlu0 %79
    %vm81 = vcmask 261312
    %82 = vst.msk [vmem:[#allocation0] sm:$0x1] %vm81, %v80
    %s83 = scalar_lea.vmem %s0, 2
    %v84 = vld [vmem:[%s83] sm:$0x1]
    %85 = vrot.lane.b32.xlu0 %v84, 16
    %v86 = vpop.permute.xlu0 %85
    %vm87 = vcmask 195712
    %88 = vst.msk [vmem:[#allocation0] sm:$0x1] %vm87, %v86
    %s89 = scalar_lea.vmem %s0, 1
    %v90 = vld [vmem:[%s89] sm:$0x1]
    %91 = vrot.lane.b32.xlu0 %v90, 8
    %v92 = vpop.permute.xlu0 %91
    %vm93 = vcmask 130112
    %94 = vst.msk [vmem:[#allocation0] sm:$0x1] %vm93, %v92
    %s96 = sshllo.u32 0, 1
    %v98 = vld [vmem:[#allocation0] sm:%s96]
    %s99 = sshllo.u32 0, 1
    %100 = vst [vmem:[%s1] sm:%s99] %v98

// kernel: up_forward.1
$region0: #{up_forward.1}
  #allocation0 [shape = 'u32[]', space=smem, size = 0x4, offset = 0x4, fixed_abs, tag = 'smem constant byte address 0x4 - core index']
  #allocation1 [shape = 'u32[144,128]{1,0:T(1,128)}', space=vmem, size = 0x12000, scoped, tag = 'internal scratch']
  #allocation2 [shape = 'f32[1,1]{1,0:T(1,128)S(6)}', space=smem, size = 0x200, scoped, tag = 'scoped memory for up_forward.1']
  %s0 = inlined_call_operand.vmem [shape: bf16[2,20,64], index: 0, kind: input, shape index: {}]
  %s1 = inlined_call_operand.vmem [shape: bf16[3,64,128], index: 1, kind: input, shape index: {}]
  %s2 = inlined_call_operand.vmem [shape: bf16[3,128,128], index: 2, kind: input, shape index: {}]
  %s3 = inlined_call_operand.vmem [shape: bf16[64,128], index: 3, kind: input, shape index: {}]
  %s4 = inlined_call_operand.vmem [shape: f32[1,128], index: 4, kind: input, shape index: {}]
  %s5 = inlined_call_operand.vmem [shape: f32[1,128], index: 5, kind: input, shape index: {}]
  %s6 = inlined_call_operand.<no memory space> [shape: f32[1,1], index: 6, kind: input, shape index: {}]
  %s7 = inlined_call_operand.vmem [shape: f32[2,16,128], index: 7, kind: output, shape index: {}]
  %s8 = sld [smem:[#allocation0]]
  $region61: #{up_forward.1} parent=0
    _
  %s10 = ssub.s32 1, %s8
  %s11 = scalar_select 0, %s10, %s8
  %12 = sst [smem:[#allocation2]] %s6
  loop: start=0, step=1, limit=6
  $region2: #{up_forward.1} parent=0 // loop_pre_header
    _
  $region3: #{up_forward.1} parent=0 // loop_header
    %s14 = sphi 0, %s18
    %p15 = scmp.ge.s32.totalorder %s14, 6
    %s21 = sphi 0, %s33
    %s22 = sphi 0, %s29
    %s23 = sphi 0, %s21
    %s24 = sphi 0, %s22
    %s25 = sphi 0, %s23
    %s26 = sphi 0, %s24
    %s36 = sphi 0, %s38
    %s39 = sphi 0, %s36
    %s40 = sphi 0, %s39
    %s56 = sphi 0, %s40
    %s60 = sphi 0, %s60
    %s62 = sphi 0, %s60
    %s63 = sphi 0, %s62
    %s77 = sphi 0, %s63
    %s81 = sphi 0, %s81
    %s83 = sphi 0, %s81
    %s84 = sphi 0, %s83
    %s98 = sphi 0, %s84
    %s102 = sphi 0, %s102
    %s104 = sphi 0, %s102
    %s105 = sphi 0, %s104
    %s119 = sphi 0, %s105
    %s123 = sphi 0, %s123
    %s125 = sphi 0, %s123
    %s126 = sphi 0, %s125
    %s140 = sphi 0, %s126
    %s144 = sphi 0, %s144
    %s146 = sphi 0, %s144
    %s147 = sphi 0, %s146
    %s161 = sphi 0, %s147
    %s165 = sphi 0, %s165
    %s167 = sphi 0, %s165
    %s168 = sphi 0, %s167
    %s182 = sphi 0, %s168
    %s190 = sphi 0, %s192
    %s193 = sphi 0, %s190
    %s194 = sphi 0, %s193
    %s210 = sphi 0, %s194
  $region4: #{up_forward.1} parent=0 // loop_header_branch
    %17 = sbr.rel (%p15) target = $region8
  $region5: #{up_forward.1} parent=0 // loop_body
    %s19 = ssub.s32 %s14, 1
    %s20 = ssub.s32 %s14, 2
    %s27 = sadd.s32 1, %s22
    %p28 = scmp.ge.s32.totalorder %s27, 2
    %s29 = scalar_select %p28, 0, %s27
    %s30 = sadd.s32 1, %s21
    %s31 = scalar_select %p28, %s30, %s21
    %p32 = scmp.ge.s32.totalorder %s31, 2
    %s33 = scalar_select %p32, 0, %s31
    %s34 = ssub.s32 %s21, %s33
    %p35 = scmp.eq.s32.totalorder %s34, 0
    %s37 = sadd.s32 %s36, 1
    %s38 = scalar_select %p35, %s36, %s37
    %p41 = pneg %p35
    %p42 = scmp.eq.s32.totalorder %s14, 3
    %p43 = por %p41, %p42
    %p44 = scmp.ne.s32.totalorder %s36, %s39
    %p45 = scmp.eq.s32.totalorder %s14, 0
    %p46 = por %p44, %p45
    %p47 = scmp.ne.s32.totalorder %s36, %s39
    %p48 = scmp.eq.s32.totalorder %s19, 3
    %p49 = por %p47, %p48
    %p50 = scmp.ne.s32.totalorder %s39, %s40
    %p51 = scmp.eq.s32.totalorder %s19, 0
    %p52 = por %p50, %p51
    %p53 = scmp.ne.s32.totalorder %s39, %s40
    %p54 = scmp.eq.s32.totalorder %s20, 3
    %p55 = por %p53, %p54
    %p57 = scmp.ne.s32.totalorder %s40, %s56
    %p58 = scmp.eq.s32.totalorder %s20, 0
    %p59 = por %p57, %p58
    %s61 = sadd.s32 %s60, 1
    %p64 = scmp.eq.s32.totalorder %s14, 3
    %p65 = scmp.ne.s32.totalorder %s60, %s62
    %p66 = scmp.eq.s32.totalorder %s14, 0
    %p67 = por %p65, %p66
    %p68 = scmp.ne.s32.totalorder %s60, %s62
    %p69 = scmp.eq.s32.totalorder %s19, 3
    %p70 = por %p68, %p69
    %p71 = scmp.ne.s32.totalorder %s62, %s63
    %p72 = scmp.eq.s32.totalorder %s19, 0
    %p73 = por %p71, %p72
    %p74 = scmp.ne.s32.totalorder %s62, %s63
    %p75 = scmp.eq.s32.totalorder %s20, 3
    %p76 = por %p74, %p75
    %p78 = scmp.ne.s32.totalorder %s63, %s77
    %p79 = scmp.eq.s32.totalorder %s20, 0
    %p80 = por %p78, %p79
    %s82 = sadd.s32 %s81, 1
    %p85 = scmp.eq.s32.totalorder %s14, 3
    %p86 = scmp.ne.s32.totalorder %s81, %s83
    %p87 = scmp.eq.s32.totalorder %s14, 0
    %p88 = por %p86, %p87
    %p89 = scmp.ne.s32.totalorder %s81, %s83
    %p90 = scmp.eq.s32.totalorder %s19, 3
    %p91 = por %p89, %p90
    %p92 = scmp.ne.s32.totalorder %s83, %s84
    %p93 = scmp.eq.s32.totalorder %s19, 0
    %p94 = por %p92, %p93
    %p95 = scmp.ne.s32.totalorder %s83, %s84
    %p96 = scmp.eq.s32.totalorder %s20, 3
    %p97 = por %p95, %p96
    %p99 = scmp.ne.s32.totalorder %s84, %s98
    %p100 = scmp.eq.s32.totalorder %s20, 0
    %p101 = por %p99, %p100
    %s103 = sadd.s32 %s102, 1
    %p106 = scmp.eq.s32.totalorder %s14, 3
    %p107 = scmp.ne.s32.totalorder %s102, %s104
    %p108 = scmp.eq.s32.totalorder %s14, 0
    %p109 = por %p107, %p108
    %p110 = scmp.ne.s32.totalorder %s102, %s104
    %p111 = scmp.eq.s32.totalorder %s19, 3
    %p112 = por %p110, %p111
    %p113 = scmp.ne.s32.totalorder %s104, %s105
    %p114 = scmp.eq.s32.totalorder %s19, 0
    %p115 = por %p113, %p114
    %p116 = scmp.ne.s32.totalorder %s104, %s105
    %p117 = scmp.eq.s32.totalorder %s20, 3
    %p118 = por %p116, %p117
    %p120 = scmp.ne.s32.totalorder %s105, %s119
    %p121 = scmp.eq.s32.totalorder %s20, 0
    %p122 = por %p120, %p121
    %s124 = sadd.s32 %s123, 1
    %p127 = scmp.eq.s32.totalorder %s14, 3
    %p128 = scmp.ne.s32.totalorder %s123, %s125
    %p129 = scmp.eq.s32.totalorder %s14, 0
    %p130 = por %p128, %p129
    %p131 = scmp.ne.s32.totalorder %s123, %s125
    %p132 = scmp.eq.s32.totalorder %s19, 3
    %p133 = por %p131, %p132
    %p134 = scmp.ne.s32.totalorder %s125, %s126
    %p135 = scmp.eq.s32.totalorder %s19, 0
    %p136 = por %p134, %p135
    %p137 = scmp.ne.s32.totalorder %s125, %s126
    %p138 = scmp.eq.s32.totalorder %s20, 3
    %p139 = por %p137, %p138
    %p141 = scmp.ne.s32.totalorder %s126, %s140
    %p142 = scmp.eq.s32.totalorder %s20, 0
    %p143 = por %p141, %p142
    %s145 = sadd.s32 %s144, 1
    %p148 = scmp.eq.s32.totalorder %s14, 3
    %p149 = scmp.ne.s32.totalorder %s144, %s146
    %p150 = scmp.eq.s32.totalorder %s14, 0
    %p151 = por %p149, %p150
    %p152 = scmp.ne.s32.totalorder %s144, %s146
    %p153 = scmp.eq.s32.totalorder %s19, 3
    %p154 = por %p152, %p153
    %p155 = scmp.ne.s32.totalorder %s146, %s147
    %p156 = scmp.eq.s32.totalorder %s19, 0
    %p157 = por %p155, %p156
    %p158 = scmp.ne.s32.totalorder %s146, %s147
    %p159 = scmp.eq.s32.totalorder %s20, 3
    %p160 = por %p158, %p159
    %p162 = scmp.ne.s32.totalorder %s147, %s161
    %p163 = scmp.eq.s32.totalorder %s20, 0
    %p164 = por %p162, %p163
    %s166 = sadd.s32 %s165, 1
    %p169 = scmp.eq.s32.totalorder %s14, 3
    %p170 = scmp.ne.s32.totalorder %s165, %s167
    %p171 = scmp.eq.s32.totalorder %s14, 0
    %p172 = por %p170, %p171
    %p173 = scmp.ne.s32.totalorder %s165, %s167
    %p174 = scmp.eq.s32.totalorder %s19, 3
    %p175 = por %p173, %p174
    %p176 = scmp.ne.s32.totalorder %s167, %s168
    %p177 = scmp.eq.s32.totalorder %s19, 0
    %p178 = por %p176, %p177
    %p179 = scmp.ne.s32.totalorder %s167, %s168
    %p180 = scmp.eq.s32.totalorder %s20, 3
    %p181 = por %p179, %p180
    %p183 = scmp.ne.s32.totalorder %s168, %s182
    %p184 = scmp.eq.s32.totalorder %s20, 0
    %p185 = por %p183, %p184
    %s186 = ssub.s32 %s21, %s33
    %s187 = ssub.s32 %s22, %s29
    %s188 = sor.u32 %s186, %s187
    %p189 = scmp.eq.s32.totalorder %s188, 0
    %s191 = sadd.s32 %s190, 1
    %s192 = scalar_select %p189, %s190, %s191
    %p195 = pneg %p189
    %p196 = scmp.eq.s32.totalorder %s14, 3
    %p197 = por %p195, %p196
    %p198 = scmp.ne.s32.totalorder %s190, %s193
    %p199 = scmp.eq.s32.totalorder %s14, 0
    %p200 = por %p198, %p199
    %p201 = scmp.ne.s32.totalorder %s190, %s193
    %p202 = scmp.eq.s32.totalorder %s19, 3
    %p203 = por %p201, %p202
    %p204 = scmp.ne.s32.totalorder %s193, %s194
    %p205 = scmp.eq.s32.totalorder %s19, 0
    %p206 = por %p204, %p205
    %p207 = scmp.ne.s32.totalorder %s193, %s194
    %p208 = scmp.eq.s32.totalorder %s20, 3
    %p209 = por %p207, %p208
    %p211 = scmp.ne.s32.totalorder %s194, %s210
    %p212 = scmp.eq.s32.totalorder %s20, 0
    %p213 = por %p211, %p212
    %p214 = scmp.le.s32.totalorder 1, %s14
    %p215 = scmp.lt.s32.totalorder %s14, 5
    %p216 = pnand %p214, %p215
    %p217 = pneg %p216
    // Predicated region
    $region9: #{up_forward.1} parent=5 // pred_check
      _
    $region10: #{up_forward.1} parent=5 // pred_check_branch
      %219 = sbr.rel (%p216) target = $region12
    $region11: #{up_forward.1} parent=5 // pred_region
      %s220 = ssub.s32 %s14, 1
      // Predicated region
      $region13: #{up_forward.1} parent=11 // pred_check
        %p221 = pneg %p73
      $region14: #{up_forward.1} parent=11 // pred_check_branch
        %223 = sbr.rel (%p221) target = $region16
      $region15: #{up_forward.1} parent=11 // pred_region
        _
      $region16: #{up_forward.1} parent=11 // pred_fallthru
        _
      // Predicated region
      $region17: #{up_forward.1} parent=11 // pred_check
        %p224 = pneg %p94
      $region18: #{up_forward.1} parent=11 // pred_check_branch
        %226 = sbr.rel (%p224) target = $region20
      $region19: #{up_forward.1} parent=11 // pred_region
        _
      $region20: #{up_forward.1} parent=11 // pred_fallthru
        _
      // Predicated region
      $region21: #{up_forward.1} parent=11 // pred_check
        %p227 = pneg %p115
      $region22: #{up_forward.1} parent=11 // pred_check_branch
        %229 = sbr.rel (%p227) target = $region24
      $region23: #{up_forward.1} parent=11 // pred_region
        _
      $region24: #{up_forward.1} parent=11 // pred_fallthru
        _
      // Predicated region
      $region25: #{up_forward.1} parent=11 // pred_check
        %p230 = pneg %p136
      $region26: #{up_forward.1} parent=11 // pred_check_branch
        %232 = sbr.rel (%p230) target = $region28
      $region27: #{up_forward.1} parent=11 // pred_region
        _
      $region28: #{up_forward.1} parent=11 // pred_fallthru
        _
      // Predicated region
      $region29: #{up_forward.1} parent=11 // pred_check
        %p233 = pneg %p157
      $region30: #{up_forward.1} parent=11 // pred_check_branch
        %235 = sbr.rel (%p233) target = $region32
      $region31: #{up_forward.1} parent=11 // pred_region
        _
      $region32: #{up_forward.1} parent=11 // pred_fallthru
        _
      // Predicated region
      $region33: #{up_forward.1} parent=11 // pred_check
        %p236 = pneg %p178
      $region34: #{up_forward.1} parent=11 // pred_check_branch
        %238 = sbr.rel (%p236) target = $region36
      $region35: #{up_forward.1} parent=11 // pred_region
        _
      $region36: #{up_forward.1} parent=11 // pred_fallthru
        _
    $region12: #{up_forward.1} parent=5 // pred_fallthru
      _
    %p239 = scmp.lt.s32.totalorder %s14, 4
    // Predicated region
    $region37: #{up_forward.1} parent=5 // pred_check
      %p240 = pneg %p239
    $region38: #{up_forward.1} parent=5 // pred_check_branch
      %242 = sbr.rel (%p240) target = $region40
    $region39: #{up_forward.1} parent=5 // pred_region
      // Predicated region
      $region41: #{up_forward.1} parent=39 // pred_check
        %p243 = pneg %p46
      $region42: #{up_forward.1} parent=39 // pred_check_branch
        %245 = sbr.rel (%p243) target = $region44
      $region43: #{up_forward.1} parent=39 // pred_region
        %p246 = scmp.lt.s32.totalorder %s21, 1
        %s247 = scalar_select %p246, %s21, 1
        %s248 = smul.addr %s247, 3
        %s249 = smul.addr %s248, 4
        %s250 = scalar_lea.vmem %s0, %s249
      $region44: #{up_forward.1} parent=39 // pred_fallthru
        _
    $region40: #{up_forward.1} parent=5 // pred_fallthru
      _
    %p251 = scmp.le.s32.totalorder 1, %s14
    %p252 = scmp.lt.s32.totalorder %s14, 5
    %p253 = pnand %p251, %p252
    %p254 = pneg %p253
    // Predicated region
    $region45: #{up_forward.1} parent=5 // pred_check
      _
    $region46: #{up_forward.1} parent=5 // pred_check_branch
      %256 = sbr.rel (%p253) target = $region48
    $region47: #{up_forward.1} parent=5 // pred_region
      %s257 = ssub.s32 %s14, 1
      %p258 = scmp.lt.s32.totalorder %s23, 1
      %s259 = scalar_select %p258, %s23, 1
      %s260 = smul.addr %s259, 3
      %s261 = smul.addr %s260, 4
      %s262 = scalar_lea.vmem %s0, %s261
      %p263 = pneg %p52
      %p264 = pneg %p49
      %p265 = pneg %p73
      %p266 = pneg %p70
      %p267 = pneg %p94
      %p268 = pneg %p91
      %p269 = pneg %p115
      %p270 = pneg %p112
      %p271 = pneg %p136
      %p272 = pneg %p133
      %p273 = pneg %p157
      %p274 = pneg %p154
      %p275 = pneg %p178
      %p276 = pneg %p175
      %p277 = pneg %p206
      %p278 = pneg %p203
      %p279 = scmp.lt.s32.totalorder %s23, 1
      %s280 = scalar_select %p279, %s23, 1
      %p281 = scmp.lt.s32.totalorder %s24, 1
      %s282 = scalar_select %p281, %s24, 1
      %s283 = smul.addr %s280, 2
      %s284 = sadd.s32 %s282, %s283
      %s285 = smul.addr %s284, 8
      %s286 = scalar_lea.vmem %s7, %s285
      %p287 = scmp.lt.s32.totalorder %s23, 1
      %s288 = scalar_select %p287, %s23, 1
      %s289 = smul.addr %s288, 3
      %s290 = smul.addr %s289, 4
      %s291 = scalar_lea.vmem %s0, %s290
      %p292 = scmp.lt.s32.totalorder %s23, 1
      %s293 = scalar_select %p292, %s23, 1
      %p294 = scmp.lt.s32.totalorder %s24, 1
      %s295 = scalar_select %p294, %s24, 1
      %s296 = smul.addr %s293, 2
      %s297 = sadd.s32 %s295, %s296
      %s298 = smul.addr %s297, 8
      %s299 = scalar_lea.vmem %s7, %s298
      %s301 = sld [smem:[#allocation2]]
      %s302 = smul.u32 %s24, 8
      %s303 = sshra.s32 %s302, 3
      %s304 = sand.u32 %s302, 7
      %s305 = smul.addr %s303, 4
      %s306 = scalar_lea.vmem %s291, %s305
      %v307 = vld [vmem:[%s306] sm:$0xf]
      %v308 = vld [vmem:[%s306 + $0x4] sm:$0x3]
      %v309 = vld [vmem:[%s1] sm:$0xf]
      %v310 = vld [vmem:[%s1 + $0x4] sm:$0xf]
      %v311 = vld [vmem:[%s1 + $0x8] sm:$0xf]
      %v312 = vld [vmem:[%s1 + $0xc] sm:$0xf]
      %v313 = vld [vmem:[%s1 + $0x10] sm:$0xf]
      %v314 = vld [vmem:[%s1 + $0x14] sm:$0xf]
      %v315 = vld [vmem:[%s1 + $0x18] sm:$0xf]
      %v316 = vld [vmem:[%s1 + $0x1c] sm:$0xf]
      %s317 = scalar_lea.vmem %s1, 32
      %v318 = vld [vmem:[%s317] sm:$0xf]
      %v319 = vld [vmem:[%s317 + $0x4] sm:$0xf]
      %v320 = vld [vmem:[%s317 + $0x8] sm:$0xf]
      %v321 = vld [vmem:[%s317 + $0xc] sm:$0xf]
      %v322 = vld [vmem:[%s317 + $0x10] sm:$0xf]
      %v323 = vld [vmem:[%s317 + $0x14] sm:$0xf]
      %v324 = vld [vmem:[%s317 + $0x18] sm:$0xf]
      %v325 = vld [vmem:[%s317 + $0x1c] sm:$0xf]
      %v328 = vunpack.c.l.b16 %v307
      %v329 = vunpack.c.l.b16 %v308
      %v330 = vpack.c.b16 %v329, %v328
      %v332 = vshrl.u32 %v330, 16
      %v334 = vshll.u32 %v330, 16
      %v336 = vrot.slane %v334, 1
      %v337 = vor.u32 %v332, %v336
      %v346 = vunpack.c.l.b16 %v318
      %v347 = vunpack.c.l.b16 %v319
      %v348 = vunpack.c.l.b16 %v320
      %v349 = vunpack.c.l.b16 %v321
      %v350 = vunpack.c.l.b16 %v322
      %v351 = vunpack.c.l.b16 %v323
      %v352 = vunpack.c.l.b16 %v324
      %v353 = vunpack.c.l.b16 %v325
      %v354 = vpack.c.b16 %v347, %v346
      %v355 = vpack.c.b16 %v349, %v348
      %v356 = vpack.c.b16 %v351, %v350
      %v357 = vpack.c.b16 %v353, %v352
      %vm362 = vcmask 523264
      %v364 = vsel %vm362, %v337, 0
      %366 = vmatprep.subr.bf16.mxu0 0
      %367 = vmatpush1.bf16.msra.mxu0 %v354
      %368 = vmatprep.subr.bf16.mxu0 0
      %369 = vmatpush1.bf16.msra.mxu0 %v355
      %370 = vmatprep.subr.bf16.mxu0 0
      %371 = vmatpush1.bf16.msra.mxu0 %v356
      %372 = vmatprep.subr.bf16.mxu0 0
      %373 = vmatpush1.bf16.msra.mxu0 %v357
      %374 = vmatprep.subr.bf16.mxu0 0
      %375 = vmatpush1.bf16.msra.mxu0 0
      %376 = vmatprep.subr.bf16.mxu0 0
      %377 = vmatpush1.bf16.msra.mxu0 0
      %378 = vmatprep.subr.bf16.mxu0 0
      %379 = vmatpush1.bf16.msra.mxu0 0
      %380 = vmatprep.subr.bf16.mxu0 0
      %381 = vmatpush1.bf16.msra.mxu0 0
      %382 = vmatprep.subr.bf16.mxu0 0
      %383 = vmatpush1.bf16.msra.mxu0 0
      %384 = vmatprep.subr.bf16.mxu0 0
      %385 = vmatpush1.bf16.msra.mxu0 0
      %386 = vmatprep.subr.bf16.mxu0 0
      %387 = vmatpush1.bf16.msra.mxu0 0
      %388 = vmatprep.subr.bf16.mxu0 0
      %389 = vmatpush1.bf16.msra.mxu0 0
      %390 = vmatprep.subr.bf16.mxu0 0
      %391 = vmatpush1.bf16.msra.mxu0 0
      %392 = vmatprep.subr.bf16.mxu0 0
      %393 = vmatpush1.bf16.msra.mxu0 0
      %394 = vmatprep.subr.bf16.mxu0 0
      %395 = vmatpush1.bf16.msra.mxu0 0
      %396 = vmatprep.subr.bf16.mxu0 0
      %397 = vmatpush1.bf16.msra.mxu0 0
      %398 = vmatprep.mubr.bf16.mxu0 0
      %399 = vmatmul.mubr.bf16.gmra.mrb[0].mxu0 %v364
      %v400 = vpop.f32.mrb[0].mxu0
      %v401 = vadd.f32 0.0, %v400
      %v402 = vpop.f32.mrb[0].mxu0
      %v403 = vpop.f32.mrb[0].mxu0
      %v404 = vadd.f32 0.0, %v403
      %v405 = vpop.f32.mrb[0].mxu0
      %406 = vdwg.mxu0
      %v415 = vunpack.c.l.b16 %v309
      %v416 = vunpack.c.l.b16 %v310
      %v417 = vunpack.c.l.b16 %v311
      %v418 = vunpack.c.l.b16 %v312
      %v419 = vunpack.c.l.b16 %v313
      %v420 = vunpack.c.l.b16 %v314
      %v421 = vunpack.c.l.b16 %v315
      %v422 = vunpack.c.l.b16 %v316
      %v423 = vpack.c.b16 %v416, %v415
      %v424 = vpack.c.b16 %v418, %v417
      %v425 = vpack.c.b16 %v420, %v419
      %v426 = vpack.c.b16 %v422, %v421
      %v431 = vsel %vm362, %v330, 0
      %433 = vmatprep.subr.bf16.mxu0 0
      %434 = vmatpush1.bf16.msra.mxu0 %v423
      %435 = vmatprep.subr.bf16.mxu0 0
      %436 = vmatpush1.bf16.msra.mxu0 %v424
      %437 = vmatprep.subr.bf16.mxu0 0
      %438 = vmatpush1.bf16.msra.mxu0 %v425
      %439 = vmatprep.subr.bf16.mxu0 0
      %440 = vmatpush1.bf16.msra.mxu0 %v426
      %441 = vmatprep.subr.bf16.mxu0 0
      %442 = vmatpush1.bf16.msra.mxu0 0
      %443 = vmatprep.subr.bf16.mxu0 0
      %444 = vmatpush1.bf16.msra.mxu0 0
      %445 = vmatprep.subr.bf16.mxu0 0
      %446 = vmatpush1.bf16.msra.mxu0 0
      %447 = vmatprep.subr.bf16.mxu0 0
      %448 = vmatpush1.bf16.msra.mxu0 0
      %449 = vmatprep.subr.bf16.mxu0 0
      %450 = vmatpush1.bf16.msra.mxu0 0
      %451 = vmatprep.subr.bf16.mxu0 0
      %452 = vmatpush1.bf16.msra.mxu0 0
      %453 = vmatprep.subr.bf16.mxu0 0
      %454 = vmatpush1.bf16.msra.mxu0 0
      %455 = vmatprep.subr.bf16.mxu0 0
      %456 = vmatpush1.bf16.msra.mxu0 0
      %457 = vmatprep.subr.bf16.mxu0 0
      %458 = vmatpush1.bf16.msra.mxu0 0
      %459 = vmatprep.subr.bf16.mxu0 0
      %460 = vmatpush1.bf16.msra.mxu0 0
      %461 = vmatprep.subr.bf16.mxu0 0
      %462 = vmatpush1.bf16.msra.mxu0 0
      %463 = vmatprep.subr.bf16.mxu0 0
      %464 = vmatpush1.bf16.msra.mxu0 0
      %465 = vmatprep.mubr.bf16.mxu0 0
      %466 = vmatmul.mubr.bf16.gmra.mrb[0].mxu0 %v431
      %v467 = vpop.f32.mrb[0].mxu0
      %v468 = vadd.f32 %v401, %v467
      %v469 = vpop.f32.mrb[0].mxu0
      %v470 = vpop.f32.mrb[0].mxu0
      %v471 = vadd.f32 %v404, %v470
      %v472 = vpop.f32.mrb[0].mxu0
      %473 = vdwg.mxu0
      %s474 = scalar_lea.vmem %s1, 64
      %v475 = vld [vmem:[%s474] sm:$0xf]
      %v476 = vld [vmem:[%s474 + $0x4] sm:$0xf]
      %v477 = vld [vmem:[%s474 + $0x8] sm:$0xf]
      %v478 = vld [vmem:[%s474 + $0xc] sm:$0xf]
      %v479 = vld [vmem:[%s474 + $0x10] sm:$0xf]
      %v480 = vld [vmem:[%s474 + $0x14] sm:$0xf]
      %v481 = vld [vmem:[%s474 + $0x18] sm:$0xf]
      %v482 = vld [vmem:[%s474 + $0x1c] sm:$0xf]
      %v483 = vrot.slane %v330, 1
      %v492 = vunpack.c.l.b16 %v475
      %v493 = vunpack.c.l.b16 %v476
      %v494 = vunpack.c.l.b16 %v477
      %v495 = vunpack.c.l.b16 %v478
      %v496 = vunpack.c.l.b16 %v479
      %v497 = vunpack.c.l.b16 %v480
      %v498 = vunpack.c.l.b16 %v481
      %v499 = vunpack.c.l.b16 %v482
      %v500 = vpack.c.b16 %v493, %v492
      %v501 = vpack.c.b16 %v495, %v494
      %v502 = vpack.c.b16 %v497, %v496
      %v503 = vpack.c.b16 %v499, %v498
      %v509 = vsel %vm362, %v483, 0
      %511 = vmatprep.subr.bf16.mxu0 0
      %512 = vmatpush1.bf16.msra.mxu0 %v500
      %513 = vmatprep.subr.bf16.mxu0 0
      %514 = vmatpush1.bf16.msra.mxu0 %v501
      %515 = vmatprep.subr.bf16.mxu0 0
      %516 = vmatpush1.bf16.msra.mxu0 %v502
      %517 = vmatprep.subr.bf16.mxu0 0
      %518 = vmatpush1.bf16.msra.mxu0 %v503
      %519 = vmatprep.subr.bf16.mxu0 0
      %520 = vmatpush1.bf16.msra.mxu0 0
      %521 = vmatprep.subr.bf16.mxu0 0
      %522 = vmatpush1.bf16.msra.mxu0 0
      %523 = vmatprep.subr.bf16.mxu0 0
      %524 = vmatpush1.bf16.msra.mxu0 0
      %525 = vmatprep.subr.bf16.mxu0 0
      %526 = vmatpush1.bf16.msra.mxu0 0
      %527 = vmatprep.subr.bf16.mxu0 0
      %528 = vmatpush1.bf16.msra.mxu0 0
      %529 = vmatprep.subr.bf16.mxu0 0
      %530 = vmatpush1.bf16.msra.mxu0 0
      %531 = vmatprep.subr.bf16.mxu0 0
      %532 = vmatpush1.bf16.msra.mxu0 0
      %533 = vmatprep.subr.bf16.mxu0 0
      %534 = vmatpush1.bf16.msra.mxu0 0
      %535 = vmatprep.subr.bf16.mxu0 0
      %536 = vmatpush1.bf16.msra.mxu0 0
      %537 = vmatprep.subr.bf16.mxu0 0
      %538 = vmatpush1.bf16.msra.mxu0 0
      %539 = vmatprep.subr.bf16.mxu0 0
      %540 = vmatpush1.bf16.msra.mxu0 0
      %541 = vmatprep.subr.bf16.mxu0 0
      %542 = vmatpush1.bf16.msra.mxu0 0
      %543 = vmatprep.mubr.bf16.mxu0 0
      %544 = vmatmul.mubr.bf16.gmra.mrb[0].mxu0 %v509
      %v545 = vpop.f32.mrb[0].mxu0
      %v546 = vadd.f32 0.0, %v545
      %v547 = vpop.f32.mrb[0].mxu0
      %v548 = vpop.f32.mrb[0].mxu0
      %v549 = vadd.f32 0.0, %v548
      %v550 = vpop.f32.mrb[0].mxu0
      %551 = vdwg.mxu0
      %v552 = vadd.f32 %v468, %v546
      %v553 = vadd.f32 %v471, %v549
      %v554 = vld [vmem:[%s4] sm:$0x1]
      %v556 = vlaneseq
      %v557 = vshrl.u32 %v556, 7
      %v558 = vsub.s32 0, %v557
      %v559 = vrot.slane %v554, %v558
      %v561 = vadd.f32 %v552, %v559
      %v562 = vadd.f32 %v553, %v559
      %vm563 = vcmp.ge.f32.partialorder %v561, 0.0
      %vm564 = vcmp.ge.f32.partialorder %v562, 0.0
      %v565 = vstv %s301
      %v566 = vmul.f32 %v565, %v561
      %v567 = vmul.f32 %v565, %v562
      %v568 = vsel %vm563, %v561, %v566
      %v569 = vsel %vm564, %v562, %v567
      %s570 = ssub.s32 %s302, 1
      %v571 = vlaneseq
      %v572 = vshrl.u32 %v571, 7
      %v573 = vadd.s32 %v572, 8
      %v574 = vstv %s570
      %v575 = vadd.s32 %v574, %v572
      %v576 = vadd.s32 %v574, %v573
      %vm577 = vcmp.ge.s32.totalorder %v575, 0
      %vm578 = vcmp.ge.s32.totalorder %v576, 0
      %vm579 = vcmp.lt.s32.totalorder %v575, 16
      %vm580 = vcmp.lt.s32.totalorder %v576, 16
      %vm581 = vmand %vm577, %vm579
      %vm582 = vmand %vm578, %vm580
      %v583 = vsel %vm581, 1, 0
      %v584 = vsel %vm582, 1, 0
      %vm585 = vcmp.eq.s32.totalorder %v583, 1
      %vm586 = vcmp.eq.s32.totalorder %v584, 1
      %v587 = vsel %vm585, %v568, 0.0
      %v588 = vsel %vm586, %v569, 0.0
      %v589 = vpack.c.bf16 %v588, %v587
      %v590 = vld [vmem:[%s2] sm:$0xf]
      %v591 = vld [vmem:[%s2 + $0x4] sm:$0xf]
      %v592 = vld [vmem:[%s2 + $0x8] sm:$0xf]
      %v593 = vld [vmem:[%s2 + $0xc] sm:$0xf]
      %v594 = vld [vmem:[%s2 + $0x10] sm:$0xf]
      %v595 = vld [vmem:[%s2 + $0x14] sm:$0xf]
      %v596 = vld [vmem:[%s2 + $0x18] sm:$0xf]
      %v597 = vld [vmem:[%s2 + $0x1c] sm:$0xf]
      %v598 = vld [vmem:[%s2 + $0x20] sm:$0xf]
      %v599 = vld [vmem:[%s2 + $0x24] sm:$0xf]
      %v600 = vld [vmem:[%s2 + $0x28] sm:$0xf]
      %v601 = vld [vmem:[%s2 + $0x2c] sm:$0xf]
      %v602 = vld [vmem:[%s2 + $0x30] sm:$0xf]
      %v603 = vld [vmem:[%s2 + $0x34] sm:$0xf]
      %v604 = vld [vmem:[%s2 + $0x38] sm:$0xf]
      %v605 = vld [vmem:[%s2 + $0x3c] sm:$0xf]
      %s606 = scalar_lea.vmem %s2, 64
      %v607 = vld [vmem:[%s606] sm:$0xf]
      %v608 = vld [vmem:[%s606 + $0x4] sm:$0xf]
      %v609 = vld [vmem:[%s606 + $0x8] sm:$0xf]
      %v610 = vld [vmem:[%s606 + $0xc] sm:$0xf]
      %v611 = vld [vmem:[%s606 + $0x10] sm:$0xf]
      %v612 = vld [vmem:[%s606 + $0x14] sm:$0xf]
      %v613 = vld [vmem:[%s606 + $0x18] sm:$0xf]
      %v614 = vld [vmem:[%s606 + $0x1c] sm:$0xf]
      %v615 = vld [vmem:[%s606 + $0x20] sm:$0xf]
      %v616 = vld [vmem:[%s606 + $0x24] sm:$0xf]
      %v617 = vld [vmem:[%s606 + $0x28] sm:$0xf]
      %v618 = vld [vmem:[%s606 + $0x2c] sm:$0xf]
      %v619 = vld [vmem:[%s606 + $0x30] sm:$0xf]
      %v620 = vld [vmem:[%s606 + $0x34] sm:$0xf]
      %v621 = vld [vmem:[%s606 + $0x38] sm:$0xf]
      %v622 = vld [vmem:[%s606 + $0x3c] sm:$0xf]
      %v624 = vshrl.u32 %v589, 16
      %v626 = vshll.u32 %v589, 16
      %v628 = vrot.slane %v626, 1
      %v629 = vor.u32 %v624, %v628
      %v647 = vunpack.c.l.b16 %v607
      %v648 = vunpack.c.l.b16 %v608
      %v649 = vunpack.c.l.b16 %v609
      %v650 = vunpack.c.l.b16 %v610
      %v651 = vunpack.c.l.b16 %v611
      %v652 = vunpack.c.l.b16 %v612
      %v653 = vunpack.c.l.b16 %v613
      %v654 = vunpack.c.l.b16 %v614
      %v655 = vunpack.c.l.b16 %v615
      %v656 = vunpack.c.l.b16 %v616
      %v657 = vunpack.c.l.b16 %v617
      %v658 = vunpack.c.l.b16 %v618
      %v659 = vunpack.c.l.b16 %v619
      %v660 = vunpack.c.l.b16 %v620
      %v661 = vunpack.c.l.b16 %v621
      %v662 = vunpack.c.l.b16 %v622
      %v663 = vpack.c.b16 %v648, %v647
      %v664 = vpack.c.b16 %v650, %v649
      %v665 = vpack.c.b16 %v652, %v651
      %v666 = vpack.c.b16 %v654, %v653
      %v667 = vpack.c.b16 %v656, %v655
      %v668 = vpack.c.b16 %v658, %v657
      %v669 = vpack.c.b16 %v660, %v659
      %v670 = vpack.c.b16 %v662, %v661
      %679 = vmatprep.subr.bf16.mxu0 0
      %680 = vmatpush1.bf16.msra.mxu0 %v663
      %681 = vmatprep.subr.bf16.mxu0 0
      %682 = vmatpush1.bf16.msra.mxu0 %v664
      %683 = vmatprep.subr.bf16.mxu0 0
      %684 = vmatpush1.bf16.msra.mxu0 %v665
      %685 = vmatprep.subr.bf16.mxu0 0
      %686 = vmatpush1.bf16.msra.mxu0 %v666
      %687 = vmatprep.subr.bf16.mxu0 0
      %688 = vmatpush1.bf16.msra.mxu0 %v667
      %689 = vmatprep.subr.bf16.mxu0 0
      %690 = vmatpush1.bf16.msra.mxu0 %v668
      %691 = vmatprep.subr.bf16.mxu0 0
      %692 = vmatpush1.bf16.msra.mxu0 %v669
      %693 = vmatprep.subr.bf16.mxu0 0
      %694 = vmatpush1.bf16.msra.mxu0 %v670
      %695 = vmatprep.subr.bf16.mxu0 0
      %696 = vmatpush1.bf16.msra.mxu0 0
      %697 = vmatprep.subr.bf16.mxu0 0
      %698 = vmatpush1.bf16.msra.mxu0 0
      %699 = vmatprep.subr.bf16.mxu0 0
      %700 = vmatpush1.bf16.msra.mxu0 0
      %701 = vmatprep.subr.bf16.mxu0 0
      %702 = vmatpush1.bf16.msra.mxu0 0
      %703 = vmatprep.subr.bf16.mxu0 0
      %704 = vmatpush1.bf16.msra.mxu0 0
      %705 = vmatprep.subr.bf16.mxu0 0
      %706 = vmatpush1.bf16.msra.mxu0 0
      %707 = vmatprep.subr.bf16.mxu0 0
      %708 = vmatpush1.bf16.msra.mxu0 0
      %709 = vmatprep.subr.bf16.mxu0 0
      %710 = vmatpush1.bf16.msra.mxu0 0
      %711 = vmatprep.mubr.bf16.mxu0 0
      %712 = vmatmul.mubr.bf16.gmra.mrb[0].mxu0 %v629
      %v713 = vpop.f32.mrb[0].mxu0
      %v714 = vadd.f32 0.0, %v713
      %v715 = vpop.f32.mrb[0].mxu0
      %v716 = vpop.f32.mrb[0].mxu0
      %v717 = vpop.f32.mrb[0].mxu0
      %718 = vdwg.mxu0
      %v735 = vunpack.c.l.b16 %v590
      %v736 = vunpack.c.l.b16 %v591
      %v737 = vunpack.c.l.b16 %v592
      %v738 = vunpack.c.l.b16 %v593
      %v739 = vunpack.c.l.b16 %v594
      %v740 = vunpack.c.l.b16 %v595
      %v741 = vunpack.c.l.b16 %v596
      %v742 = vunpack.c.l.b16 %v597
      %v743 = vunpack.c.l.b16 %v598
      %v744 = vunpack.c.l.b16 %v599
      %v745 = vunpack.c.l.b16 %v600
      %v746 = vunpack.c.l.b16 %v601
      %v747 = vunpack.c.l.b16 %v602
      %v748 = vunpack.c.l.b16 %v603
      %v749 = vunpack.c.l.b16 %v604
      %v750 = vunpack.c.l.b16 %v605
      %v751 = vpack.c.b16 %v736, %v735
      %v752 = vpack.c.b16 %v738, %v737
      %v753 = vpack.c.b16 %v740, %v739
      %v754 = vpack.c.b16 %v742, %v741
      %v755 = vpack.c.b16 %v744, %v743
      %v756 = vpack.c.b16 %v746, %v745
      %v757 = vpack.c.b16 %v748, %v747
      %v758 = vpack.c.b16 %v750, %v749
      %767 = vmatprep.subr.bf16.mxu0 0
      %768 = vmatpush1.bf16.msra.mxu0 %v751
      %769 = vmatprep.subr.bf16.mxu0 0
      %770 = vmatpush1.bf16.msra.mxu0 %v752
      %771 = vmatprep.subr.bf16.mxu0 0
      %772 = vmatpush1.bf16.msra.mxu0 %v753
      %773 = vmatprep.subr.bf16.mxu0 0
      %774 = vmatpush1.bf16.msra.mxu0 %v754
      %775 = vmatprep.subr.bf16.mxu0 0
      %776 = vmatpush1.bf16.msra.mxu0 %v755
      %777 = vmatprep.subr.bf16.mxu0 0
      %778 = vmatpush1.bf16.msra.mxu0 %v756
      %779 = vmatprep.subr.bf16.mxu0 0
      %780 = vmatpush1.bf16.msra.mxu0 %v757
      %781 = vmatprep.subr.bf16.mxu0 0
      %782 = vmatpush1.bf16.msra.mxu0 %v758
      %783 = vmatprep.subr.bf16.mxu0 0
      %784 = vmatpush1.bf16.msra.mxu0 0
      %785 = vmatprep.subr.bf16.mxu0 0
      %786 = vmatpush1.bf16.msra.mxu0 0
      %787 = vmatprep.subr.bf16.mxu0 0
      %788 = vmatpush1.bf16.msra.mxu0 0
      %789 = vmatprep.subr.bf16.mxu0 0
      %790 = vmatpush1.bf16.msra.mxu0 0
      %791 = vmatprep.subr.bf16.mxu0 0
      %792 = vmatpush1.bf16.msra.mxu0 0
      %793 = vmatprep.subr.bf16.mxu0 0
      %794 = vmatpush1.bf16.msra.mxu0 0
      %795 = vmatprep.subr.bf16.mxu0 0
      %796 = vmatpush1.bf16.msra.mxu0 0
      %797 = vmatprep.subr.bf16.mxu0 0
      %798 = vmatpush1.bf16.msra.mxu0 0
      %799 = vmatprep.mubr.bf16.mxu0 0
      %800 = vmatmul.mubr.bf16.gmra.mrb[0].mxu0 %v589
      %v801 = vpop.f32.mrb[0].mxu0
      %v802 = vadd.f32 %v714, %v801
      %v803 = vpop.f32.mrb[0].mxu0
      %v804 = vpop.f32.mrb[0].mxu0
      %v805 = vpop.f32.mrb[0].mxu0
      %806 = vdwg.mxu0
      %s807 = scalar_lea.vmem %s2, 128
      %v808 = vld [vmem:[%s807] sm:$0xf]
      %v809 = vld [vmem:[%s807 + $0x4] sm:$0xf]
      %v810 = vld [vmem:[%s807 + $0x8] sm:$0xf]
      %v811 = vld [vmem:[%s807 + $0xc] sm:$0xf]
      %v812 = vld [vmem:[%s807 + $0x10] sm:$0xf]
      %v813 = vld [vmem:[%s807 + $0x14] sm:$0xf]
      %v814 = vld [vmem:[%s807 + $0x18] sm:$0xf]
      %v815 = vld [vmem:[%s807 + $0x1c] sm:$0xf]
      %v816 = vld [vmem:[%s807 + $0x20] sm:$0xf]
      %v817 = vld [vmem:[%s807 + $0x24] sm:$0xf]
      %v818 = vld [vmem:[%s807 + $0x28] sm:$0xf]
      %v819 = vld [vmem:[%s807 + $0x2c] sm:$0xf]
      %v820 = vld [vmem:[%s807 + $0x30] sm:$0xf]
      %v821 = vld [vmem:[%s807 + $0x34] sm:$0xf]
      %v822 = vld [vmem:[%s807 + $0x38] sm:$0xf]
      %v823 = vld [vmem:[%s807 + $0x3c] sm:$0xf]
      %v825 = vrot.slane %v589, 1
      %v843 = vunpack.c.l.b16 %v808
      %v844 = vunpack.c.l.b16 %v809
      %v845 = vunpack.c.l.b16 %v810
      %v846 = vunpack.c.l.b16 %v811
      %v847 = vunpack.c.l.b16 %v812
      %v848 = vunpack.c.l.b16 %v813
      %v849 = vunpack.c.l.b16 %v814
      %v850 = vunpack.c.l.b16 %v815
      %v851 = vunpack.c.l.b16 %v816
      %v852 = vunpack.c.l.b16 %v817
      %v853 = vunpack.c.l.b16 %v818
      %v854 = vunpack.c.l.b16 %v819
      %v855 = vunpack.c.l.b16 %v820
      %v856 = vunpack.c.l.b16 %v821
      %v857 = vunpack.c.l.b16 %v822
      %v858 = vunpack.c.l.b16 %v823
      %v859 = vpack.c.b16 %v844, %v843
      %v860 = vpack.c.b16 %v846, %v845
      %v861 = vpack.c.b16 %v848, %v847
      %v862 = vpack.c.b16 %v850, %v849
      %v863 = vpack.c.b16 %v852, %v851
      %v864 = vpack.c.b16 %v854, %v853
      %v865 = vpack.c.b16 %v856, %v855
      %v866 = vpack.c.b16 %v858, %v857
      %875 = vmatprep.subr.bf16.mxu0 0
      %876 = vmatpush1.bf16.msra.mxu0 %v859
      %877 = vmatprep.subr.bf16.mxu0 0
      %878 = vmatpush1.bf16.msra.mxu0 %v860
      %879 = vmatprep.subr.bf16.mxu0 0
      %880 = vmatpush1.bf16.msra.mxu0 %v861
      %881 = vmatprep.subr.bf16.mxu0 0
      %882 = vmatpush1.bf16.msra.mxu0 %v862
      %883 = vmatprep.subr.bf16.mxu0 0
      %884 = vmatpush1.bf16.msra.mxu0 %v863
      %885 = vmatprep.subr.bf16.mxu0 0
      %886 = vmatpush1.bf16.msra.mxu0 %v864
      %887 = vmatprep.subr.bf16.mxu0 0
      %888 = vmatpush1.bf16.msra.mxu0 %v865
      %889 = vmatprep.subr.bf16.mxu0 0
      %890 = vmatpush1.bf16.msra.mxu0 %v866
      %891 = vmatprep.subr.bf16.mxu0 0
      %892 = vmatpush1.bf16.msra.mxu0 0
      %893 = vmatprep.subr.bf16.mxu0 0
      %894 = vmatpush1.bf16.msra.mxu0 0
      %895 = vmatprep.subr.bf16.mxu0 0
      %896 = vmatpush1.bf16.msra.mxu0 0
      %897 = vmatprep.subr.bf16.mxu0 0
      %898 = vmatpush1.bf16.msra.mxu0 0
      %899 = vmatprep.subr.bf16.mxu0 0
      %900 = vmatpush1.bf16.msra.mxu0 0
      %901 = vmatprep.subr.bf16.mxu0 0
      %902 = vmatpush1.bf16.msra.mxu0 0
      %903 = vmatprep.subr.bf16.mxu0 0
      %904 = vmatpush1.bf16.msra.mxu0 0
      %905 = vmatprep.subr.bf16.mxu0 0
      %906 = vmatpush1.bf16.msra.mxu0 0
      %907 = vmatprep.mubr.bf16.mxu0 0
      %908 = vmatmul.mubr.bf16.gmra.mrb[0].mxu0 %v825
      %v909 = vpop.f32.mrb[0].mxu0
      %v910 = vadd.f32 0.0, %v909
      %v911 = vpop.f32.mrb[0].mxu0
      %v912 = vpop.f32.mrb[0].mxu0
      %v913 = vpop.f32.mrb[0].mxu0
      %914 = vdwg.mxu0
      %v915 = vadd.f32 %v802, %v910
      %v916 = vld [vmem:[%s3] sm:$0xf]
      %v917 = vld [vmem:[%s3 + $0x4] sm:$0xf]
      %v918 = vld [vmem:[%s3 + $0x8] sm:$0xf]
      %v919 = vld [vmem:[%s3 + $0xc] sm:$0xf]
      %v920 = vld [vmem:[%s3 + $0x10] sm:$0xf]
      %v921 = vld [vmem:[%s3 + $0x14] sm:$0xf]
      %v922 = vld [vmem:[%s3 + $0x18] sm:$0xf]
      %v923 = vld [vmem:[%s3 + $0x1c] sm:$0xf]
      %v932 = vunpack.c.l.b16 %v916
      %v933 = vunpack.c.l.b16 %v917
      %v934 = vunpack.c.l.b16 %v918
      %v935 = vunpack.c.l.b16 %v919
      %v936 = vunpack.c.l.b16 %v920
      %v937 = vunpack.c.l.b16 %v921
      %v938 = vunpack.c.l.b16 %v922
      %v939 = vunpack.c.l.b16 %v923
      %v940 = vpack.c.b16 %v933, %v932
      %v941 = vpack.c.b16 %v935, %v934
      %v942 = vpack.c.b16 %v937, %v936
      %v943 = vpack.c.b16 %v939, %v938
      %948 = vmatprep.subr.bf16.mxu0 0
      %949 = vmatpush1.bf16.msra.mxu0 %v940
      %950 = vmatprep.subr.bf16.mxu0 0
      %951 = vmatpush1.bf16.msra.mxu0 %v941
      %952 = vmatprep.subr.bf16.mxu0 0
      %953 = vmatpush1.bf16.msra.mxu0 %v942
      %954 = vmatprep.subr.bf16.mxu0 0
      %955 = vmatpush1.bf16.msra.mxu0 %v943
      %956 = vmatprep.subr.bf16.mxu0 0
      %957 = vmatpush1.bf16.msra.mxu0 0
      %958 = vmatprep.subr.bf16.mxu0 0
      %959 = vmatpush1.bf16.msra.mxu0 0
      %960 = vmatprep.subr.bf16.mxu0 0
      %961 = vmatpush1.bf16.msra.mxu0 0
      %962 = vmatprep.subr.bf16.mxu0 0
      %963 = vmatpush1.bf16.msra.mxu0 0
      %964 = vmatprep.subr.bf16.mxu0 0
      %965 = vmatpush1.bf16.msra.mxu0 0
      %966 = vmatprep.subr.bf16.mxu0 0
      %967 = vmatpush1.bf16.msra.mxu0 0
      %968 = vmatprep.subr.bf16.mxu0 0
      %969 = vmatpush1.bf16.msra.mxu0 0
      %970 = vmatprep.subr.bf16.mxu0 0
      %971 = vmatpush1.bf16.msra.mxu0 0
      %972 = vmatprep.subr.bf16.mxu0 0
      %973 = vmatpush1.bf16.msra.mxu0 0
      %974 = vmatprep.subr.bf16.mxu0 0
      %975 = vmatpush1.bf16.msra.mxu0 0
      %976 = vmatprep.subr.bf16.mxu0 0
      %977 = vmatpush1.bf16.msra.mxu0 0
      %978 = vmatprep.subr.bf16.mxu0 0
      %979 = vmatpush1.bf16.msra.mxu0 0
      %980 = vmatprep.mubr.bf16.mxu0 0
      %981 = vmatmul.mubr.bf16.gmra.mrb[0].mxu0 %v509
      %v982 = vpop.f32.mrb[0].mxu0
      %v983 = vadd.f32 0.0, %v982
      %v984 = vpop.f32.mrb[0].mxu0
      %v985 = vpop.f32.mrb[0].mxu0
      %v986 = vpop.f32.mrb[0].mxu0
      %987 = vdwg.mxu0
      %v988 = vadd.f32 %v915, %v983
      %v989 = vld [vmem:[%s5] sm:$0x1]
      %v991 = vlaneseq
      %v992 = vshrl.u32 %v991, 7
      %v993 = vsub.s32 0, %v992
      %v994 = vrot.slane %v989, %v993
      %v996 = vadd.f32 %v988, %v994
      %vm997 = vcmp.ge.f32.partialorder %v996, 0.0
      %v998 = vmul.f32 %v565, %v996
      %v999 = vsel %vm997, %v996, %v998
      %1000 = vst [vmem:[%s299] sm:$0xff] %v999
      %p1001 = scmp.lt.s32.totalorder %s23, 1
      %s1002 = scalar_select %p1001, %s23, 1
      %p1003 = scmp.lt.s32.totalorder %s24, 1
      %s1004 = scalar_select %p1003, %s24, 1
      %s1005 = smul.addr %s1002, 2
      %s1006 = sadd.s32 %s1004, %s1005
      %s1007 = smul.addr %s1006, 8
      %s1008 = scalar_lea.vmem %s7, %s1007
      // Predicated region
      $region49: #{up_forward.1} parent=47 // pred_check
        %p1009 = pneg %p203
      $region50: #{up_forward.1} parent=47 // pred_check_branch
        %1011 = sbr.rel (%p1009) target = $region52
      $region51: #{up_forward.1} parent=47 // pred_region
        _
      $region52: #{up_forward.1} parent=47 // pred_fallthru
        _
    $region48: #{up_forward.1} parent=5 // pred_fallthru
      _
    %p1012 = scmp.le.s32.totalorder 2, %s14
    // Predicated region
    $region53: #{up_forward.1} parent=5 // pred_check
      %p1013 = pneg %p1012
    $region54: #{up_forward.1} parent=5 // pred_check_branch
      %1015 = sbr.rel (%p1013) target = $region56
    $region55: #{up_forward.1} parent=5 // pred_region
      %s1016 = ssub.s32 %s14, 2
      // Predicated region
      $region57: #{up_forward.1} parent=55 // pred_check
        %p1017 = pneg %p209
      $region58: #{up_forward.1} parent=55 // pred_check_branch
        %1019 = sbr.rel (%p1017) target = $region60
      $region59: #{up_forward.1} parent=55 // pred_region
        %p1020 = scmp.lt.s32.totalorder %s25, 1
        %s1021 = scalar_select %p1020, %s25, 1
        %p1022 = scmp.lt.s32.totalorder %s26, 1
        %s1023 = scalar_select %p1022, %s26, 1
        %s1024 = smul.addr %s1021, 2
        %s1025 = sadd.s32 %s1023, %s1024
        %s1026 = smul.addr %s1025, 8
        %s1027 = scalar_lea.vmem %s7, %s1026
      $region60: #{up_forward.1} parent=55 // pred_fallthru
        _
    $region56: #{up_forward.1} parent=5 // pred_fallthru
      _
  $region6: #{up_forward.1} parent=0 // loop_footer
    %s18 = sadd.s32 1, %s14
  $region7: #{up_forward.1} parent=0 // loop_footer_branch
    %13 = sbr.rel target = $region3
  $region8: #{up_forward.1} parent=0 // loop_exit
    _

</llo_original>
